<compile_context>
chip_gen: v5e
topology: v5e:2x2
jax: 0.10.0
libtpu: 0.0.40
codegen_flags: <defaults>
</compile_context>

<pallas_src>
import functools

import jax
import jax.numpy as jnp
from jax.experimental import pallas as pl
from jax.experimental.pallas import tpu as pltpu


def _round_up(x, m):
    return ((x + m - 1) // m) * m


# ----------------------------------------------------------------------------
# Kernel
# ----------------------------------------------------------------------------
def _lstm_seq_kernel(x_ref, h0_ref, c0_ref, wx_ref, wh_ref, b_ref,
                     h_out_ref, c_out_ref, h_scr, *, Hp):
    t = pl.program_id(1)

    # Start of a batch tile: load the initial state.  c is carried directly in
    # its (revisited, constant-index-over-t) output block; h is carried in VMEM
    # scratch in the MXU dtype so no per-step cast is needed before the dot.
    @pl.when(t == 0)
    def _():
        h_scr[...] = h0_ref[...].astype(h_scr.dtype)
        c_out_ref[...] = c0_ref[...]

    # Two resident-weight MXU dots (no staging copy), f32 accumulation.
    gates = (jnp.dot(x_ref[0], wx_ref[...], preferred_element_type=jnp.float32)
             + jnp.dot(h_scr[...], wh_ref[...], preferred_element_type=jnp.float32)
             + b_ref[...])

    # PyTorch LSTMCell gate order [i, f, g, o]; slices are 128-lane aligned.
    i = jax.nn.sigmoid(gates[:, 0 * Hp:1 * Hp])
    f = jax.nn.sigmoid(gates[:, 1 * Hp:2 * Hp])
    g = jnp.tanh(gates[:, 2 * Hp:3 * Hp])
    o = jax.nn.sigmoid(gates[:, 3 * Hp:4 * Hp])

    # f32 elementwise state update (v5e-friendly).  Pad lanes stay exactly 0
    # because W/b pads are 0 and the initial state pads are 0.
    c_new = f * c_out_ref[...] + i * g
    h_new = o * jnp.tanh(c_new)

    c_out_ref[...] = c_new                       # resident; HBM writeback 1x/tile
    h_scr[...] = h_new.astype(h_scr.dtype)       # carried h in MXU dtype
    h_out_ref[0] = h_new.astype(h_out_ref.dtype)


# ----------------------------------------------------------------------------
# Parameter packing (done once, outside the kernel)
# ----------------------------------------------------------------------------
def pack_params(w_ih, w_hh, b, *, d_h, mxu_dtype=jnp.bfloat16):
    """Pad LSTMCell weights into lane-aligned, zero-padded matrices.

    w_ih: (D_in, 4H), w_hh: (H, 4H), b: (1, 4H) with b = b_ih + b_hh and gate
    order [i, f, g, o].  Returns (W_x (D_in, 4*Hp), W_h (Hp, 4*Hp)) in
    `mxu_dtype` and b (1, 4*Hp) in f32, gate stride Hp = round_up(H, 128).

    Invariant (required for correctness of the padded lanes): all pad entries
    (rows >= H of W_h, columns outside each gate's [k*Hp, k*Hp+H) window, pad
    lanes of b) are exactly zero, so pad lanes of h/c stay exactly zero.
    """
    d_in = w_ih.shape[0]
    H = d_h
    Hp = _round_up(H, 128)
    wx = jnp.zeros((d_in, 4 * Hp), jnp.float32)
    wh = jnp.zeros((Hp, 4 * Hp), jnp.float32)
    bp = jnp.zeros((1, 4 * Hp), jnp.float32)
    for k in range(4):
        wx = wx.at[:, k * Hp:k * Hp + H].set(w_ih[:, k * H:(k + 1) * H])
        wh = wh.at[:H, k * Hp:k * Hp + H].set(w_hh[:, k * H:(k + 1) * H])
        bp = bp.at[:, k * Hp:k * Hp + H].set(b[:, k * H:(k + 1) * H])
    return wx.astype(mxu_dtype), wh.astype(mxu_dtype), bp


# ----------------------------------------------------------------------------
# Wrappers
# ----------------------------------------------------------------------------
def _pick_batch_tile(B, b_tile):
    """Batch tile: >=2 tiles when B >= 16 (v7x megacore), else one big tile."""
    B8 = _round_up(max(B, 1), 8)
    if b_tile is not None:
        bt = min(_round_up(b_tile, 8), B8)
    elif B8 >= 16:
        bt = min(_round_up((B8 + 1) // 2, 8), 1024)
    else:
        bt = B8
    Bp = _round_up(B8, bt)
    return bt, Bp


def dkt_sequence(hc0, x_seq, packed, *, d_h, b_tile=None):
    """Run the full LSTMCell recurrence inside one pallas_call.

    hc0: (h0, c0) each (B, d_h) f32; x_seq: (T, B, D_in) f32.
    Returns (h_all (T, B, d_h) f32, c_final (B, d_h) f32).
    """
    wx, wh, b = packed
    h0, c0 = hc0
    T, B, d_in = x_seq.shape
    H = d_h
    Hp = wh.shape[0]
    mxu_dtype = wx.dtype

    bt, Bp = _pick_batch_tile(B, b_tile)

    # x streams un-padded on D_in and in the MXU dtype; batch padded to 8.
    xp = jnp.zeros((T, Bp, d_in), mxu_dtype).at[:, :B, :].set(
        x_seq.astype(mxu_dtype))
    h0p = jnp.zeros((Bp, Hp), jnp.float32).at[:B, :H].set(h0)
    c0p = jnp.zeros((Bp, Hp), jnp.float32).at[:B, :H].set(c0)

    grid = (Bp // bt, T)
    kernel = functools.partial(_lstm_seq_kernel, Hp=Hp)

    cost = pl.CostEstimate(
        flops=2 * T * Bp * (d_in + Hp) * 4 * Hp,
        transcendentals=5 * T * Bp * Hp,
        bytes_accessed=(xp.size * xp.dtype.itemsize
                        + (wx.size + wh.size) * wx.dtype.itemsize
                        + (b.size + h0p.size + c0p.size) * 4
                        + T * Bp * Hp * 4      # h_all writeback
                        + Bp * Hp * 4),        # c written once per tile
    )

    h_all, c_fin = pl.pallas_call(
        kernel,
        grid=grid,
        in_specs=[
            pl.BlockSpec((1, bt, d_in), lambda bi, t: (t, bi, 0)),  # x_t stream
            pl.BlockSpec((bt, Hp), lambda bi, t: (bi, 0)),          # h0
            pl.BlockSpec((bt, Hp), lambda bi, t: (bi, 0)),          # c0
            pl.BlockSpec((d_in, 4 * Hp), lambda bi, t: (0, 0)),     # resident W_x
            pl.BlockSpec((Hp, 4 * Hp), lambda bi, t: (0, 0)),       # resident W_h
            pl.BlockSpec((1, 4 * Hp), lambda bi, t: (0, 0)),        # resident b
        ],
        out_specs=[
            pl.BlockSpec((1, bt, Hp), lambda bi, t: (t, bi, 0)),    # h_t per step
            pl.BlockSpec((bt, Hp), lambda bi, t: (bi, 0)),          # c: 1x per tile
        ],
        out_shape=[
            jax.ShapeDtypeStruct((T, Bp, Hp), jnp.float32),
            jax.ShapeDtypeStruct((Bp, Hp), jnp.float32),
        ],
        scratch_shapes=[
            pltpu.VMEM((bt, Hp), mxu_dtype),   # carried h (MXU dtype)
        ],
        compiler_params=pltpu.CompilerParams(
            dimension_semantics=("parallel", "arbitrary"),
            vmem_limit_bytes=32 * 1024 * 1024,
        ),
        cost_estimate=cost,
    )(xp, h0p, c0p, wx, wh, b)

    return h_all[:, :B, :H], c_fin[:B, :H]


def dkt_cell(hc, x, packed, *, d_h):
    """Single LSTMCell step (== DKTCell.forward): hc=(h,c) (B,d_h), x (B,D_in)."""
    h_all, c_fin = dkt_sequence(hc, x[None], packed, d_h=d_h)
    return h_all[0], c_fin


# ----------------------------------------------------------------------------
# Reference & init
# ----------------------------------------------------------------------------
def init_raw_params(key, n_kc, n_ex, d_h):
    """PyTorch-LSTMCell-style init: U(-1/sqrt(d_h), 1/sqrt(d_h)). b = b_ih + b_hh."""
    d_in = 2 * n_ex + n_kc
    k = 1.0 / jnp.sqrt(jnp.float32(d_h))
    k1, k2, k3, k4 = jax.random.split(key, 4)
    w_ih = jax.random.uniform(k1, (d_in, 4 * d_h), jnp.float32, -k, k)
    w_hh = jax.random.uniform(k2, (d_h, 4 * d_h), jnp.float32, -k, k)
    b_ih = jax.random.uniform(k3, (1, 4 * d_h), jnp.float32, -k, k)
    b_hh = jax.random.uniform(k4, (1, 4 * d_h), jnp.float32, -k, k)
    return w_ih, w_hh, b_ih + b_hh


def reference_lstm_cell(hc, x, raw):
    w_ih, w_hh, b = raw
    h, c = hc
    gates = x @ w_ih + h @ w_hh + b
    H = h.shape[1]
    i = jax.nn.sigmoid(gates[:, 0 * H:1 * H])
    f = jax.nn.sigmoid(gates[:, 1 * H:2 * H])
    g = jnp.tanh(gates[:, 2 * H:3 * H])
    o = jax.nn.sigmoid(gates[:, 3 * H:4 * H])
    c_new = f * c + i * g
    h_new = o * jnp.tanh(c_new)
    return h_new, c_new


if __name__ == "__main__":
    n_kc, n_ex, d_h = 8, 12, 16          # D_in = 2*12 + 8 = 32
    d_in = 2 * n_ex + n_kc
    B, T = 2, 8

    key = jax.random.PRNGKey(0)
    kp, kx, kh, kc = jax.random.split(key, 4)
    w_ih, w_hh, b = init_raw_params(kp, n_kc, n_ex, d_h)
    raw = (w_ih, w_hh, b)

    x_seq = jax.random.normal(kx, (T, B, d_in), jnp.float32)
    h0 = jax.random.normal(kh, (B, d_h), jnp.float32)
    c0 = jax.random.normal(kc, (B, d_h), jnp.float32)

    # --- single step (module forward), f32 MXU path: tight tolerance ---------
    packed_f32 = pack_params(w_ih, w_hh, b, d_h=d_h, mxu_dtype=jnp.float32)
    h1, c1 = dkt_cell((h0, c0), x_seq[0], packed_f32, d_h=d_h)
    jax.block_until_ready((h1, c1))
    h1_ref, c1_ref = reference_lstm_cell((h0, c0), x_seq[0], raw)
    assert jnp.allclose(h1, h1_ref, atol=1e-5), "single-step h mismatch"
    assert jnp.allclose(c1, c1_ref, atol=1e-5), "single-step c mismatch"

    # --- fused full-sequence recurrence, f32 path: tight tolerance -----------
    ha32, cf32 = dkt_sequence((h0, c0), x_seq, packed_f32, d_h=d_h)

    # --- fused full-sequence recurrence, bf16 MXU operands (fast path) -------
    packed_bf16 = pack_params(w_ih, w_hh, b, d_h=d_h, mxu_dtype=jnp.bfloat16)
    ha16, cf16 = dkt_sequence((h0, c0), x_seq, packed_bf16, d_h=d_h)
    jax.block_until_ready((ha32, cf32, ha16, cf16))

    h_r, c_r = h0, c0
    for t in range(T):
        h_r, c_r = reference_lstm_cell((h_r, c_r), x_seq[t], raw)
        assert jnp.allclose(ha32[t], h_r, atol=1e-4), f"seq(f32) h mismatch t={t}"
        assert jnp.allclose(ha16[t], h_r, atol=5e-2), f"seq(bf16) h mismatch t={t}"
    assert jnp.allclose(cf32, c_r, atol=1e-4), "seq(f32) final-c mismatch"
    assert jnp.allclose(cf16, c_r, atol=5e-2), "seq(bf16) final-c mismatch"

    print("KERNEL_OK")
</pallas_src>

<mosaic_0001>
module attributes {stable_mosaic.version = 11 : i64} {
  func.func @_lstm_seq_kernel(%arg0: i32, %arg1: i32, %arg2: memref<1x8x32xf32, #tpu.memory_space<vmem>>, %arg3: memref<8x128xf32, #tpu.memory_space<vmem>>, %arg4: memref<8x128xf32, #tpu.memory_space<vmem>>, %arg5: memref<32x512xf32, #tpu.memory_space<vmem>>, %arg6: memref<128x512xf32, #tpu.memory_space<vmem>>, %arg7: memref<1x512xf32, #tpu.memory_space<vmem>>, %arg8: memref<1x8x128xf32, #tpu.memory_space<vmem>>, %arg9: memref<8x128xf32, #tpu.memory_space<vmem>>, %arg10: memref<8x128xf32, #tpu.memory_space<vmem>>) attributes {dimension_semantics = [#tpu.dimension_semantics<parallel>, #tpu.dimension_semantics<arbitrary>], iteration_bounds = array<i64: 1, 1>, scalar_prefetch = 0 : i64, scratch_operands = 1 : i64, tpu.core_type = #tpu.core_type<tc>, window_params = [{transform_indices = @transform_0, window_bounds = array<i64: 1, 8, 32>}, {transform_indices = @transform_1, window_bounds = array<i64: 8, 128>}, {transform_indices = @transform_2, window_bounds = array<i64: 8, 128>}, {pipeline_mode = #tpu.pipeline_mode<synchronous>, transform_indices = @transform_3, window_bounds = array<i64: 32, 512>}, {pipeline_mode = #tpu.pipeline_mode<synchronous>, transform_indices = @transform_4, window_bounds = array<i64: 128, 512>}, {pipeline_mode = #tpu.pipeline_mode<synchronous>, transform_indices = @transform_5, window_bounds = array<i64: 1, 512>}, {transform_indices = @transform_6, window_bounds = array<i64: 1, 8, 128>}, {transform_indices = @transform_7, window_bounds = array<i64: 8, 128>}]} {
    %c0_i32 = arith.constant 0 : i32
    %0 = arith.cmpi eq, %arg1, %c0_i32 : i32
    %1 = arith.extui %0 : i1 to i32
    %c0_i32_0 = arith.constant 0 : i32
    %2 = arith.cmpi ne, %1, %c0_i32_0 : i32
    scf.if %2 {
      %c0_24 = arith.constant 0 : index
      %c0_25 = arith.constant 0 : index
      %45 = vector.load %arg3[%c0_24, %c0_25] : memref<8x128xf32, #tpu.memory_space<vmem>>, vector<8x128xf32>
      %c0_26 = arith.constant 0 : index
      %c0_27 = arith.constant 0 : index
      %46 = vector.load %arg10[%c0_26, %c0_27] : memref<8x128xf32, #tpu.memory_space<vmem>>, vector<8x128xf32>
      tpu.vector_store %arg10[%c0_26, %c0_27], %45 {strides = array<i32>} : memref<8x128xf32, #tpu.memory_space<vmem>>, vector<8x128xf32>,
      %c0_28 = arith.constant 0 : index
      %c0_29 = arith.constant 0 : index
      %47 = vector.load %arg4[%c0_28, %c0_29] : memref<8x128xf32, #tpu.memory_space<vmem>>, vector<8x128xf32>
      %c0_30 = arith.constant 0 : index
      %c0_31 = arith.constant 0 : index
      %48 = vector.load %arg9[%c0_30, %c0_31] : memref<8x128xf32, #tpu.memory_space<vmem>>, vector<8x128xf32>
      tpu.vector_store %arg9[%c0_30, %c0_31], %47 {strides = array<i32>} : memref<8x128xf32, #tpu.memory_space<vmem>>, vector<8x128xf32>,
    } else {
    }
    %c0 = arith.constant 0 : index
    %c0_1 = arith.constant 0 : index
    %c0_2 = arith.constant 0 : index
    %3 = vector.load %arg2[%c0, %c0_1, %c0_2] : memref<1x8x32xf32, #tpu.memory_space<vmem>>, vector<1x8x32xf32>
    %4 = vector.shape_cast %3 : vector<1x8x32xf32> to vector<8x32xf32>
    %c0_3 = arith.constant 0 : index
    %c0_4 = arith.constant 0 : index
    %5 = vector.load %arg5[%c0_3, %c0_4] : memref<32x512xf32, #tpu.memory_space<vmem>>, vector<32x512xf32>
    %cst = arith.constant dense<0.000000e+00> : vector<8x512xf32>
    %6 = tpu.matmul %4, %5, %cst {dimension_numbers = #tpu.dot_dimension_numbers<[1], [0], [0], [1], [0, 0, 1, 1], [], []>} : vector<8x32xf32>, vector<32x512xf32>, vector<8x512xf32> -> vector<8x512xf32>
    %c0_5 = arith.constant 0 : index
    %c0_6 = arith.constant 0 : index
    %7 = vector.load %arg10[%c0_5, %c0_6] : memref<8x128xf32, #tpu.memory_space<vmem>>, vector<8x128xf32>
    %c0_7 = arith.constant 0 : index
    %c0_8 = arith.constant 0 : index
    %8 = vector.load %arg6[%c0_7, %c0_8] : memref<128x512xf32, #tpu.memory_space<vmem>>, vector<128x512xf32>
    %cst_9 = arith.constant dense<0.000000e+00> : vector<8x512xf32>
    %9 = tpu.matmul %7, %8, %cst_9 {dimension_numbers = #tpu.dot_dimension_numbers<[1], [0], [0], [1], [0, 0, 1, 1], [], []>} : vector<8x128xf32>, vector<128x512xf32>, vector<8x512xf32> -> vector<8x512xf32>
    %10 = arith.addf %6, %9 : vector<8x512xf32>
    %c0_10 = arith.constant 0 : index
    %c0_11 = arith.constant 0 : index
    %11 = vector.load %arg7[%c0_10, %c0_11] : memref<1x512xf32, #tpu.memory_space<vmem>>, vector<1x512xf32>
    %12 = vector.broadcast %11 : vector<1x512xf32> to vector<8x512xf32>
    %13 = arith.addf %10, %12 : vector<8x512xf32>
    %14 = vector.extract_strided_slice %13 {offsets = [0, 0], sizes = [8, 128], strides = [1, 1]} : vector<8x512xf32> to vector<8x128xf32>
    %15 = arith.negf %14 : vector<8x128xf32>
    %16 = math.exp %15 : vector<8x128xf32>
    %cst_12 = arith.constant 1.000000e+00 : f32
    %17 = vector.broadcast %cst_12 : f32 to vector<8x128xf32>
    %18 = arith.addf %17, %16 : vector<8x128xf32>
    %19 = arith.divf %17, %18 : vector<8x128xf32>
    %20 = vector.extract_strided_slice %13 {offsets = [0, 128], sizes = [8, 128], strides = [1, 1]} : vector<8x512xf32> to vector<8x128xf32>
    %21 = arith.negf %20 : vector<8x128xf32>
    %22 = math.exp %21 : vector<8x128xf32>
    %cst_13 = arith.constant 1.000000e+00 : f32
    %23 = vector.broadcast %cst_13 : f32 to vector<8x128xf32>
    %24 = arith.addf %23, %22 : vector<8x128xf32>
    %25 = arith.divf %23, %24 : vector<8x128xf32>
    %26 = vector.extract_strided_slice %13 {offsets = [0, 256], sizes = [8, 128], strides = [1, 1]} : vector<8x512xf32> to vector<8x128xf32>
    %27 = math.tanh %26 : vector<8x128xf32>
    %28 = vector.extract_strided_slice %13 {offsets = [0, 384], sizes = [8, 128], strides = [1, 1]} : vector<8x512xf32> to vector<8x128xf32>
    %29 = arith.negf %28 : vector<8x128xf32>
    %30 = math.exp %29 : vector<8x128xf32>
    %cst_14 = arith.constant 1.000000e+00 : f32
    %31 = vector.broadcast %cst_14 : f32 to vector<8x128xf32>
    %32 = arith.addf %31, %30 : vector<8x128xf32>
    %33 = arith.divf %31, %32 : vector<8x128xf32>
    %c0_15 = arith.constant 0 : index
    %c0_16 = arith.constant 0 : index
    %34 = vector.load %arg9[%c0_15, %c0_16] : memref<8x128xf32, #tpu.memory_space<vmem>>, vector<8x128xf32>
    %35 = arith.mulf %25, %34 : vector<8x128xf32>
    %36 = arith.mulf %19, %27 : vector<8x128xf32>
    %37 = arith.addf %35, %36 : vector<8x128xf32>
    %38 = math.tanh %37 : vector<8x128xf32>
    %39 = arith.mulf %33, %38 : vector<8x128xf32>
    %c0_17 = arith.constant 0 : index
    %c0_18 = arith.constant 0 : index
    %40 = vector.load %arg9[%c0_17, %c0_18] : memref<8x128xf32, #tpu.memory_space<vmem>>, vector<8x128xf32>
    tpu.vector_store %arg9[%c0_17, %c0_18], %37 {strides = array<i32>} : memref<8x128xf32, #tpu.memory_space<vmem>>, vector<8x128xf32>,
    %c0_19 = arith.constant 0 : index
    %c0_20 = arith.constant 0 : index
    %41 = vector.load %arg10[%c0_19, %c0_20] : memref<8x128xf32, #tpu.memory_space<vmem>>, vector<8x128xf32>
    tpu.vector_store %arg10[%c0_19, %c0_20], %39 {strides = array<i32>} : memref<8x128xf32, #tpu.memory_space<vmem>>, vector<8x128xf32>,
    %c0_21 = arith.constant 0 : index
    %c0_22 = arith.constant 0 : index
    %c0_23 = arith.constant 0 : index
    %42 = vector.load %arg8[%c0_21, %c0_22, %c0_23] : memref<1x8x128xf32, #tpu.memory_space<vmem>>, vector<1x8x128xf32>
    %43 = vector.shape_cast %42 : vector<1x8x128xf32> to vector<8x128xf32>
    %44 = vector.shape_cast %39 : vector<8x128xf32> to vector<1x8x128xf32>
    tpu.vector_store %arg8[%c0_21, %c0_22, %c0_23], %44 {strides = array<i32>} : memref<1x8x128xf32, #tpu.memory_space<vmem>>, vector<1x8x128xf32>,
    return
  }
  func.func @transform_0(%arg0: i32, %arg1: i32) -> (i32, i32, i32) {
    %c0_i32 = arith.constant 0 : i32
    %c0_i32_0 = arith.constant 0 : i32
    return %arg1, %arg0, %c0_i32 : i32, i32, i32
  }
  func.func @transform_1(%arg0: i32, %arg1: i32) -> (i32, i32) {
    %c0_i32 = arith.constant 0 : i32
    %c0_i32_0 = arith.constant 0 : i32
    return %arg0, %c0_i32 : i32, i32
  }
  func.func @transform_2(%arg0: i32, %arg1: i32) -> (i32, i32) {
    %c0_i32 = arith.constant 0 : i32
    %c0_i32_0 = arith.constant 0 : i32
    return %arg0, %c0_i32 : i32, i32
  }
  func.func @transform_3(%arg0: i32, %arg1: i32) -> (i32, i32) {
    %c0_i32 = arith.constant 0 : i32
    %c0_i32_0 = arith.constant 0 : i32
    %c0_i32_1 = arith.constant 0 : i32
    return %c0_i32, %c0_i32_0 : i32, i32
  }
  func.func @transform_4(%arg0: i32, %arg1: i32) -> (i32, i32) {
    %c0_i32 = arith.constant 0 : i32
    %c0_i32_0 = arith.constant 0 : i32
    %c0_i32_1 = arith.constant 0 : i32
    return %c0_i32, %c0_i32_0 : i32, i32
  }
  func.func @transform_5(%arg0: i32, %arg1: i32) -> (i32, i32) {
    %c0_i32 = arith.constant 0 : i32
    %c0_i32_0 = arith.constant 0 : i32
    %c0_i32_1 = arith.constant 0 : i32
    return %c0_i32, %c0_i32_0 : i32, i32
  }
  func.func @transform_6(%arg0: i32, %arg1: i32) -> (i32, i32, i32) {
    %c0_i32 = arith.constant 0 : i32
    %c0_i32_0 = arith.constant 0 : i32
    return %arg1, %arg0, %c0_i32 : i32, i32, i32
  }
  func.func @transform_7(%arg0: i32, %arg1: i32) -> (i32, i32) {
    %c0_i32 = arith.constant 0 : i32
    %c0_i32_0 = arith.constant 0 : i32
    return %arg0, %c0_i32 : i32, i32
  }
}

</mosaic_0001>

<llo_original>
// kernel: tpu_custom_call.1
$region0: #{tpu_custom_call.1}
  #allocation0 [shape = 'u32[]', space=smem, size = 0x4, offset = 0x4, fixed_abs, tag = 'smem constant byte address 0x4 - core index']
  #allocation1 [shape = 'u32[72,128]{1,0:T(1,128)}', space=vmem, size = 0x9000, scoped, tag = 'internal scratch']
  #allocation2 [shape = 'f32[8,128]{1,0:T(8,128)}', space=vmem, size = 0x1000, scoped, tag = 'scratch operand']
  %s0 = inlined_call_operand.hbm [shape: f32[1,8,32], index: 0, kind: input, shape index: {}]
  %s1 = inlined_call_operand.hbm [shape: f32[8,128], index: 1, kind: input, shape index: {}]
  %s2 = inlined_call_operand.hbm [shape: f32[8,128], index: 2, kind: input, shape index: {}]
  %s3 = inlined_call_operand.hbm [shape: f32[32,512], index: 3, kind: input, shape index: {}]
  %s4 = inlined_call_operand.hbm [shape: f32[128,512], index: 4, kind: input, shape index: {}]
  %s5 = inlined_call_operand.vmem [shape: f32[1,512], index: 5, kind: input, shape index: {}]
  %s6 = inlined_call_operand.hbm [shape: f32[1,8,128], index: 6, kind: output, shape index: {0}]
  %s7 = inlined_call_operand.hbm [shape: f32[8,128], index: 7, kind: output, shape index: {1}]
  %8 = xla_tuple %s6, %s7
  %s9 = sld [smem:[#allocation0]]
  $region66: #{tpu_custom_call.1} parent=0
    _
  %s11 = ssub.s32 1, %s9
  %s12 = scalar_select 0, %s11, %s9
  $region1: #{tpu_custom_call.1} parent=0
    #allocation3 [shape = 'u8[4096]{0}', space=vmem, size = 0x1000, scoped, tag = 'input window, operand 0, single buffered']
    #allocation4 [shape = 's32[1]{0}', space=sflag, size = 0x4, scoped, tag = 'scoped memory for tpu_custom_call.1']
    #allocation5 [shape = 's32[1]{0}', space=sflag, size = 0x4, scoped, tag = 'scoped memory for tpu_custom_call.1']
    #allocation6 [shape = 'u8[4096]{0}', space=vmem, size = 0x1000, scoped, tag = 'input window, operand 1, single buffered']
    #allocation7 [shape = 's32[1]{0}', space=sflag, size = 0x4, scoped, tag = 'scoped memory for tpu_custom_call.1']
    #allocation8 [shape = 'u8[4096]{0}', space=vmem, size = 0x1000, scoped, tag = 'input window, operand 2, single buffered']
    #allocation9 [shape = 'u8[65536]{0}', space=vmem, size = 0x10000, scoped, tag = 'input window, operand 3, single buffered']
    #allocation10 [shape = 's32[1]{0}', space=sflag, size = 0x4, scoped, tag = 'scoped memory for tpu_custom_call.1']
    #allocation11 [shape = 'u8[262144]{0}', space=vmem, size = 0x40000, scoped, tag = 'input window, operand 4, single buffered']
    #allocation12 [shape = 'u8[4096]{0}', space=vmem, size = 0x1000, scoped, tag = 'output window, operand 0, single buffered']
    #allocation13 [shape = 'u8[4096]{0}', space=vmem, size = 0x1000, scoped, tag = 'output window, operand 1, single buffered']
    #allocation14 [shape = 's32[1]{0}', space=sflag, size = 0x4, scoped, tag = 'scoped memory for tpu_custom_call.1']
    %13 = vsyncpa [#allocation4], 0
    %14 = vsyncpa [#allocation7], 0
    %15 = vsyncpa [#allocation10], 0
    %16 = vsyncpa [#allocation5], 0
    %17 = vsyncpa [#allocation14], 0
    // Predicated region
    $region2: #{tpu_custom_call.1} parent=1 // pred_check
      _
    $region3: #{tpu_custom_call.1} parent=1 // pred_check_branch
      %19 = sbr.rel (0) target = $region5
    $region4: #{tpu_custom_call.1} parent=1 // pred_region
      %21 = vsyncadd [#allocation4], 0
      %s23 = sshll.u32 %s0, 4
      %s24 = int_to_ptr.hbm [resolvable:$true] %s23
      %s25 = sshll.u32 [#allocation3], 4
      %s26 = int_to_ptr.vmem [resolvable:$true] %s25
      %28 = dma.hbm_to_vmem [thread:$0]  %s24, 128, %s26, [#allocation4]
    $region5: #{tpu_custom_call.1} parent=1 // pred_fallthru
      _
    // Predicated region
    $region6: #{tpu_custom_call.1} parent=1 // pred_check
      _
    $region7: #{tpu_custom_call.1} parent=1 // pred_check_branch
      %30 = sbr.rel (0) target = $region9
    $region8: #{tpu_custom_call.1} parent=1 // pred_region
      %32 = vsyncadd [#allocation7], 0
      %s34 = sshll.u32 %s1, 4
      %s35 = int_to_ptr.hbm [resolvable:$true] %s34
      %s36 = sshll.u32 [#allocation6], 4
      %s37 = int_to_ptr.vmem [resolvable:$true] %s36
      %39 = dma.hbm_to_vmem [thread:$0]  %s35, 128, %s37, [#allocation7]
    $region9: #{tpu_custom_call.1} parent=1 // pred_fallthru
      _
    // Predicated region
    $region10: #{tpu_custom_call.1} parent=1 // pred_check
      _
    $region11: #{tpu_custom_call.1} parent=1 // pred_check_branch
      %41 = sbr.rel (0) target = $region13
    $region12: #{tpu_custom_call.1} parent=1 // pred_region
      %43 = vsyncadd [#allocation7], 0
      %s45 = sshll.u32 %s2, 4
      %s46 = int_to_ptr.hbm [resolvable:$true] %s45
      %s47 = sshll.u32 [#allocation8], 4
      %s48 = int_to_ptr.vmem [resolvable:$true] %s47
      %50 = dma.hbm_to_vmem [thread:$0]  %s46, 128, %s48, [#allocation7]
    $region13: #{tpu_custom_call.1} parent=1 // pred_fallthru
      _
    // Predicated region
    $region14: #{tpu_custom_call.1} parent=1 // pred_check
      _
    $region15: #{tpu_custom_call.1} parent=1 // pred_check_branch
      %52 = sbr.rel (0) target = $region17
    $region16: #{tpu_custom_call.1} parent=1 // pred_region
      %54 = vsyncadd [#allocation10], 0
      %s55 = sshll.u32 %s3, 4
      %s56 = int_to_ptr.hbm [resolvable:$true] %s55
      %s57 = sshll.u32 [#allocation9], 4
      %s58 = int_to_ptr.vmem [resolvable:$true] %s57
      %63 = dma.hbm_to_vmem [thread:$0]  %s56, 2048, %s58, [#allocation10], 512, 512, 32
    $region17: #{tpu_custom_call.1} parent=1 // pred_fallthru
      _
    // Predicated region
    $region18: #{tpu_custom_call.1} parent=1 // pred_check
      _
    $region19: #{tpu_custom_call.1} parent=1 // pred_check_branch
      %65 = sbr.rel (0) target = $region21
    $region20: #{tpu_custom_call.1} parent=1 // pred_region
      %67 = vsyncadd [#allocation10], 0
      %s68 = sshll.u32 %s4, 4
      %s69 = int_to_ptr.hbm [resolvable:$true] %s68
      %s70 = sshll.u32 [#allocation11], 4
      %s71 = int_to_ptr.vmem [resolvable:$true] %s70
      %76 = dma.hbm_to_vmem [thread:$0]  %s69, 8192, %s71, [#allocation10], 512, 512, 32
    $region21: #{tpu_custom_call.1} parent=1 // pred_fallthru
      _
    // Predicated region
    $region22: #{tpu_custom_call.1} parent=1 // pred_check
      _
    $region23: #{tpu_custom_call.1} parent=1 // pred_check_branch
      %78 = sbr.rel (0) target = $region25
    $region24: #{tpu_custom_call.1} parent=1 // pred_region
      _
    $region25: #{tpu_custom_call.1} parent=1 // pred_fallthru
      _
    // Predicated region
    $region26: #{tpu_custom_call.1} parent=1 // pred_check
      _
    $region27: #{tpu_custom_call.1} parent=1 // pred_check_branch
      %80 = sbr.rel (0) target = $region29
    $region28: #{tpu_custom_call.1} parent=1 // pred_region
      %82 = dma.done [#allocation4], 128
    $region29: #{tpu_custom_call.1} parent=1 // pred_fallthru
      _
    // Predicated region
    $region30: #{tpu_custom_call.1} parent=1 // pred_check
      _
    $region31: #{tpu_custom_call.1} parent=1 // pred_check_branch
      %84 = sbr.rel (0) target = $region33
    $region32: #{tpu_custom_call.1} parent=1 // pred_region
      %86 = dma.done [#allocation7], 128
    $region33: #{tpu_custom_call.1} parent=1 // pred_fallthru
      _
    // Predicated region
    $region34: #{tpu_custom_call.1} parent=1 // pred_check
      _
    $region35: #{tpu_custom_call.1} parent=1 // pred_check_branch
      %88 = sbr.rel (0) target = $region37
    $region36: #{tpu_custom_call.1} parent=1 // pred_region
      %90 = dma.done [#allocation7], 128
    $region37: #{tpu_custom_call.1} parent=1 // pred_fallthru
      _
    // Predicated region
    $region38: #{tpu_custom_call.1} parent=1 // pred_check
      _
    $region39: #{tpu_custom_call.1} parent=1 // pred_check_branch
      %92 = sbr.rel (0) target = $region41
    $region40: #{tpu_custom_call.1} parent=1 // pred_region
      %94 = dma.done [#allocation10], 2048
    $region41: #{tpu_custom_call.1} parent=1 // pred_fallthru
      _
    // Predicated region
    $region42: #{tpu_custom_call.1} parent=1 // pred_check
      _
    $region43: #{tpu_custom_call.1} parent=1 // pred_check_branch
      %96 = sbr.rel (0) target = $region45
    $region44: #{tpu_custom_call.1} parent=1 // pred_region
      %98 = dma.done [#allocation10], 8192
    $region45: #{tpu_custom_call.1} parent=1 // pred_fallthru
      _
    %p99 = scmp.eq.s32.totalorder 0, 0
    // Predicated region
    $region46: #{tpu_custom_call.1} parent=1 // pred_check
      %p100 = pneg %p99
    $region47: #{tpu_custom_call.1} parent=1 // pred_check_branch
      %102 = sbr.rel (%p100) target = $region49
    $region48: #{tpu_custom_call.1} parent=1 // pred_region
      %v103 = vld [vmem:[#allocation6] sm:$0xff]
      %104 = vst [vmem:[#allocation2] sm:$0xff] %v103
      %v105 = vld [vmem:[#allocation8] sm:$0xff]
      %106 = vst [vmem:[#allocation13] sm:$0xff] %v105
    $region49: #{tpu_custom_call.1} parent=1 // pred_fallthru
      _
    %v107 = vld [vmem:[#allocation3] sm:$0xff]
    %v108 = vld [vmem:[#allocation9] sm:$0xff]
    %v109 = vld [vmem:[#allocation9 + $0x8] sm:$0xff]
    %v110 = vld [vmem:[#allocation9 + $0x10] sm:$0xff]
    %v111 = vld [vmem:[#allocation9 + $0x18] sm:$0xff]
    %v112 = vld [vmem:[#allocation9 + $0x20] sm:$0xff]
    %v113 = vld [vmem:[#allocation9 + $0x28] sm:$0xff]
    %v114 = vld [vmem:[#allocation9 + $0x30] sm:$0xff]
    %v115 = vld [vmem:[#allocation9 + $0x38] sm:$0xff]
    %v116 = vld [vmem:[#allocation9 + $0x40] sm:$0xff]
    %v117 = vld [vmem:[#allocation9 + $0x48] sm:$0xff]
    %v118 = vld [vmem:[#allocation9 + $0x50] sm:$0xff]
    %v119 = vld [vmem:[#allocation9 + $0x58] sm:$0xff]
    %v120 = vld [vmem:[#allocation9 + $0x60] sm:$0xff]
    %v121 = vld [vmem:[#allocation9 + $0x68] sm:$0xff]
    %v122 = vld [vmem:[#allocation9 + $0x70] sm:$0xff]
    %v123 = vld [vmem:[#allocation9 + $0x78] sm:$0xff]
    %v124 = vld [vmem:[#allocation2] sm:$0xff]
    %v125 = vld [vmem:[#allocation11] sm:$0xff]
    %v126 = vld [vmem:[#allocation11 + $0x8] sm:$0xff]
    %v127 = vld [vmem:[#allocation11 + $0x10] sm:$0xff]
    %v128 = vld [vmem:[#allocation11 + $0x18] sm:$0xff]
    %v129 = vld [vmem:[#allocation11 + $0x20] sm:$0xff]
    %v130 = vld [vmem:[#allocation11 + $0x28] sm:$0xff]
    %v131 = vld [vmem:[#allocation11 + $0x30] sm:$0xff]
    %v132 = vld [vmem:[#allocation11 + $0x38] sm:$0xff]
    %v133 = vld [vmem:[#allocation11 + $0x40] sm:$0xff]
    %v134 = vld [vmem:[#allocation11 + $0x48] sm:$0xff]
    %v135 = vld [vmem:[#allocation11 + $0x50] sm:$0xff]
    %v136 = vld [vmem:[#allocation11 + $0x58] sm:$0xff]
    %v137 = vld [vmem:[#allocation11 + $0x60] sm:$0xff]
    %v138 = vld [vmem:[#allocation11 + $0x68] sm:$0xff]
    %v139 = vld [vmem:[#allocation11 + $0x70] sm:$0xff]
    %v140 = vld [vmem:[#allocation11 + $0x78] sm:$0xff]
    %v141 = vld [vmem:[#allocation11 + $0x80] sm:$0xff]
    %v142 = vld [vmem:[#allocation11 + $0x88] sm:$0xff]
    %v143 = vld [vmem:[#allocation11 + $0x90] sm:$0xff]
    %v144 = vld [vmem:[#allocation11 + $0x98] sm:$0xff]
    %v145 = vld [vmem:[#allocation11 + $0xa0] sm:$0xff]
    %v146 = vld [vmem:[#allocation11 + $0xa8] sm:$0xff]
    %v147 = vld [vmem:[#allocation11 + $0xb0] sm:$0xff]
    %v148 = vld [vmem:[#allocation11 + $0xb8] sm:$0xff]
    %v149 = vld [vmem:[#allocation11 + $0xc0] sm:$0xff]
    %v150 = vld [vmem:[#allocation11 + $0xc8] sm:$0xff]
    %v151 = vld [vmem:[#allocation11 + $0xd0] sm:$0xff]
    %v152 = vld [vmem:[#allocation11 + $0xd8] sm:$0xff]
    %v153 = vld [vmem:[#allocation11 + $0xe0] sm:$0xff]
    %v154 = vld [vmem:[#allocation11 + $0xe8] sm:$0xff]
    %v155 = vld [vmem:[#allocation11 + $0xf0] sm:$0xff]
    %v156 = vld [vmem:[#allocation11 + $0xf8] sm:$0xff]
    %v157 = vld [vmem:[#allocation11 + $0x100] sm:$0xff]
    %v158 = vld [vmem:[#allocation11 + $0x108] sm:$0xff]
    %v159 = vld [vmem:[#allocation11 + $0x110] sm:$0xff]
    %v160 = vld [vmem:[#allocation11 + $0x118] sm:$0xff]
    %v161 = vld [vmem:[#allocation11 + $0x120] sm:$0xff]
    %v162 = vld [vmem:[#allocation11 + $0x128] sm:$0xff]
    %v163 = vld [vmem:[#allocation11 + $0x130] sm:$0xff]
    %v164 = vld [vmem:[#allocation11 + $0x138] sm:$0xff]
    %v165 = vld [vmem:[#allocation11 + $0x140] sm:$0xff]
    %v166 = vld [vmem:[#allocation11 + $0x148] sm:$0xff]
    %v167 = vld [vmem:[#allocation11 + $0x150] sm:$0xff]
    %v168 = vld [vmem:[#allocation11 + $0x158] sm:$0xff]
    %v169 = vld [vmem:[#allocation11 + $0x160] sm:$0xff]
    %v170 = vld [vmem:[#allocation11 + $0x168] sm:$0xff]
    %v171 = vld [vmem:[#allocation11 + $0x170] sm:$0xff]
    %v172 = vld [vmem:[#allocation11 + $0x178] sm:$0xff]
    %v173 = vld [vmem:[#allocation11 + $0x180] sm:$0xff]
    %v174 = vld [vmem:[#allocation11 + $0x188] sm:$0xff]
    %v175 = vld [vmem:[#allocation11 + $0x190] sm:$0xff]
    %v176 = vld [vmem:[#allocation11 + $0x198] sm:$0xff]
    %v177 = vld [vmem:[#allocation11 + $0x1a0] sm:$0xff]
    %v178 = vld [vmem:[#allocation11 + $0x1a8] sm:$0xff]
    %v179 = vld [vmem:[#allocation11 + $0x1b0] sm:$0xff]
    %v180 = vld [vmem:[#allocation11 + $0x1b8] sm:$0xff]
    %v181 = vld [vmem:[#allocation11 + $0x1c0] sm:$0xff]
    %v182 = vld [vmem:[#allocation11 + $0x1c8] sm:$0xff]
    %v183 = vld [vmem:[#allocation11 + $0x1d0] sm:$0xff]
    %v184 = vld [vmem:[#allocation11 + $0x1d8] sm:$0xff]
    %v185 = vld [vmem:[#allocation11 + $0x1e0] sm:$0xff]
    %v186 = vld [vmem:[#allocation11 + $0x1e8] sm:$0xff]
    %v187 = vld [vmem:[#allocation11 + $0x1f0] sm:$0xff]
    %v188 = vld [vmem:[#allocation11 + $0x1f8] sm:$0xff]
    %189 = vmatpush.msra.mxu0 %v185
    %190 = vmatpush.msra.mxu0 %v181
    %191 = vmatpush.msra.mxu0 %v177
    %192 = vmatpush.msra.mxu0 %v173
    %193 = vmatpush.msra.mxu0 %v169
    %194 = vmatpush.msra.mxu0 %v165
    %195 = vmatpush.msra.mxu0 %v161
    %196 = vmatpush.msra.mxu0 %v157
    %197 = vmatpush.msra.mxu0 %v153
    %198 = vmatpush.msra.mxu0 %v149
    %199 = vmatpush.msra.mxu0 %v145
    %200 = vmatpush.msra.mxu0 %v141
    %201 = vmatpush.msra.mxu0 %v137
    %202 = vmatpush.msra.mxu0 %v133
    %203 = vmatpush.msra.mxu0 %v129
    %204 = vmatpush.msra.mxu0 %v125
    %205 = vmatmul.f32.gmra.mxu0 %v124
    %v206 = vpop.f32.mrf.mxu0
    %v207 = vadd.f32 0.0, %v206
    %208 = vdwg.mxu0
    %209 = vmatpush.msra.mxu0 %v186
    %210 = vmatpush.msra.mxu0 %v182
    %211 = vmatpush.msra.mxu0 %v178
    %212 = vmatpush.msra.mxu0 %v174
    %213 = vmatpush.msra.mxu0 %v170
    %214 = vmatpush.msra.mxu0 %v166
    %215 = vmatpush.msra.mxu0 %v162
    %216 = vmatpush.msra.mxu0 %v158
    %217 = vmatpush.msra.mxu0 %v154
    %218 = vmatpush.msra.mxu0 %v150
    %219 = vmatpush.msra.mxu0 %v146
    %220 = vmatpush.msra.mxu0 %v142
    %221 = vmatpush.msra.mxu0 %v138
    %222 = vmatpush.msra.mxu0 %v134
    %223 = vmatpush.msra.mxu0 %v130
    %224 = vmatpush.msra.mxu0 %v126
    %225 = vmatmul.f32.gmra.mxu0 %v124
    %v226 = vpop.f32.mrf.mxu0
    %v227 = vadd.f32 0.0, %v226
    %228 = vdwg.mxu0
    %229 = vmatpush.msra.mxu0 %v187
    %230 = vmatpush.msra.mxu0 %v183
    %231 = vmatpush.msra.mxu0 %v179
    %232 = vmatpush.msra.mxu0 %v175
    %233 = vmatpush.msra.mxu0 %v171
    %234 = vmatpush.msra.mxu0 %v167
    %235 = vmatpush.msra.mxu0 %v163
    %236 = vmatpush.msra.mxu0 %v159
    %237 = vmatpush.msra.mxu0 %v155
    %238 = vmatpush.msra.mxu0 %v151
    %239 = vmatpush.msra.mxu0 %v147
    %240 = vmatpush.msra.mxu0 %v143
    %241 = vmatpush.msra.mxu0 %v139
    %242 = vmatpush.msra.mxu0 %v135
    %243 = vmatpush.msra.mxu0 %v131
    %244 = vmatpush.msra.mxu0 %v127
    %245 = vmatmul.f32.gmra.mxu0 %v124
    %v246 = vpop.f32.mrf.mxu0
    %v247 = vadd.f32 0.0, %v246
    %248 = vdwg.mxu0
    %249 = vmatpush.msra.mxu0 %v188
    %250 = vmatpush.msra.mxu0 %v184
    %251 = vmatpush.msra.mxu0 %v180
    %252 = vmatpush.msra.mxu0 %v176
    %253 = vmatpush.msra.mxu0 %v172
    %254 = vmatpush.msra.mxu0 %v168
    %255 = vmatpush.msra.mxu0 %v164
    %256 = vmatpush.msra.mxu0 %v160
    %257 = vmatpush.msra.mxu0 %v156
    %258 = vmatpush.msra.mxu0 %v152
    %259 = vmatpush.msra.mxu0 %v148
    %260 = vmatpush.msra.mxu0 %v144
    %261 = vmatpush.msra.mxu0 %v140
    %262 = vmatpush.msra.mxu0 %v136
    %263 = vmatpush.msra.mxu0 %v132
    %264 = vmatpush.msra.mxu0 %v128
    %265 = vmatmul.f32.gmra.mxu0 %v124
    %v266 = vpop.f32.mrf.mxu0
    %v267 = vadd.f32 0.0, %v266
    %268 = vdwg.mxu0
    %vm269 = vcmask 261120
    %v271 = vsel %vm269, %v107, 0
    %273 = vmatpush.msra.mxu0 0.0
    %274 = vmatpush.msra.mxu0 0.0
    %275 = vmatpush.msra.mxu0 0.0
    %276 = vmatpush.msra.mxu0 0.0
    %277 = vmatpush.msra.mxu0 0.0
    %278 = vmatpush.msra.mxu0 0.0
    %279 = vmatpush.msra.mxu0 0.0
    %280 = vmatpush.msra.mxu0 0.0
    %281 = vmatpush.msra.mxu0 0.0
    %282 = vmatpush.msra.mxu0 0.0
    %283 = vmatpush.msra.mxu0 0.0
    %284 = vmatpush.msra.mxu0 0.0
    %285 = vmatpush.msra.mxu0 %v120
    %286 = vmatpush.msra.mxu0 %v116
    %287 = vmatpush.msra.mxu0 %v112
    %288 = vmatpush.msra.mxu0 %v108
    %289 = vmatmul.f32.gmra.mxu0 %v271
    %v290 = vpop.f32.mrf.mxu0
    %v291 = vadd.f32 %v207, %v290
    %292 = vdwg.mxu0
    %293 = vmatpush.msra.mxu0 0.0
    %294 = vmatpush.msra.mxu0 0.0
    %295 = vmatpush.msra.mxu0 0.0
    %296 = vmatpush.msra.mxu0 0.0
    %297 = vmatpush.msra.mxu0 0.0
    %298 = vmatpush.msra.mxu0 0.0
    %299 = vmatpush.msra.mxu0 0.0
    %300 = vmatpush.msra.mxu0 0.0
    %301 = vmatpush.msra.mxu0 0.0
    %302 = vmatpush.msra.mxu0 0.0
    %303 = vmatpush.msra.mxu0 0.0
    %304 = vmatpush.msra.mxu0 0.0
    %305 = vmatpush.msra.mxu0 %v121
    %306 = vmatpush.msra.mxu0 %v117
    %307 = vmatpush.msra.mxu0 %v113
    %308 = vmatpush.msra.mxu0 %v109
    %309 = vmatmul.f32.gmra.mxu0 %v271
    %v310 = vpop.f32.mrf.mxu0
    %v311 = vadd.f32 %v227, %v310
    %312 = vdwg.mxu0
    %313 = vmatpush.msra.mxu0 0.0
    %314 = vmatpush.msra.mxu0 0.0
    %315 = vmatpush.msra.mxu0 0.0
    %316 = vmatpush.msra.mxu0 0.0
    %317 = vmatpush.msra.mxu0 0.0
    %318 = vmatpush.msra.mxu0 0.0
    %319 = vmatpush.msra.mxu0 0.0
    %320 = vmatpush.msra.mxu0 0.0
    %321 = vmatpush.msra.mxu0 0.0
    %322 = vmatpush.msra.mxu0 0.0
    %323 = vmatpush.msra.mxu0 0.0
    %324 = vmatpush.msra.mxu0 0.0
    %325 = vmatpush.msra.mxu0 %v122
    %326 = vmatpush.msra.mxu0 %v118
    %327 = vmatpush.msra.mxu0 %v114
    %328 = vmatpush.msra.mxu0 %v110
    %329 = vmatmul.f32.gmra.mxu0 %v271
    %v330 = vpop.f32.mrf.mxu0
    %v331 = vadd.f32 %v247, %v330
    %332 = vdwg.mxu0
    %333 = vmatpush.msra.mxu0 0.0
    %334 = vmatpush.msra.mxu0 0.0
    %335 = vmatpush.msra.mxu0 0.0
    %336 = vmatpush.msra.mxu0 0.0
    %337 = vmatpush.msra.mxu0 0.0
    %338 = vmatpush.msra.mxu0 0.0
    %339 = vmatpush.msra.mxu0 0.0
    %340 = vmatpush.msra.mxu0 0.0
    %341 = vmatpush.msra.mxu0 0.0
    %342 = vmatpush.msra.mxu0 0.0
    %343 = vmatpush.msra.mxu0 0.0
    %344 = vmatpush.msra.mxu0 0.0
    %345 = vmatpush.msra.mxu0 %v123
    %346 = vmatpush.msra.mxu0 %v119
    %347 = vmatpush.msra.mxu0 %v115
    %348 = vmatpush.msra.mxu0 %v111
    %349 = vmatmul.f32.gmra.mxu0 %v271
    %v350 = vpop.f32.mrf.mxu0
    %v351 = vadd.f32 %v267, %v350
    %352 = vdwg.mxu0
    %v353 = vld [vmem:[%s5] sm:$0xf]
    %v355 = vperm.slane %v353, 0
    %v356 = vperm.slane %v353, 1
    %v357 = vperm.slane %v353, 2
    %v358 = vperm.slane %v353, 3
    %v363 = vadd.f32 %v291, %v355
    %v364 = vadd.f32 %v311, %v356
    %v365 = vadd.f32 %v331, %v357
    %v366 = vadd.f32 %v351, %v358
    %v367 = vxor.u32 %v363, 2147483648
    %v368 = vmul.f32 %v367, 1.442695
    %v369 = vpow.pop %v368
    %v370 = vadd.f32 %v369, 1.0
    %v371 = vrcp.pop %v370
    %v372 = vmul.f32 %v370, %v371
    %v373 = vsub.f32 1.0, %v372
    %v374 = vmul.f32 %v371, %v373
    %v375 = vadd.f32 %v371, %v374
    %vm376 = vweird.f32 %v370
    %vm377 = vweird.f32 %v371
    %vm378 = vmor %vm376, %vm377
    %v379 = vsel %vm378, %v371, %v375
    %v380 = vand.u32 2147483647, %v370
    %vm381 = vcmp.eq.f32.partialorder %v380, 8.507059e+37
    %v382 = vand.u32 %v370, 2147483648
    %v383 = vor.u32 1.1754944e-38, %v382
    %v384 = vsel %vm381, %v383, %v379
    %v385 = vmul.f32 1.0, %v384
    %v386 = vxor.u32 %v364, 2147483648
    %v387 = vmul.f32 %v386, 1.442695
    %v388 = vpow.pop %v387
    %v389 = vadd.f32 %v388, 1.0
    %v390 = vrcp.pop %v389
    %v391 = vmul.f32 %v389, %v390
    %v392 = vsub.f32 1.0, %v391
    %v393 = vmul.f32 %v390, %v392
    %v394 = vadd.f32 %v390, %v393
    %vm395 = vweird.f32 %v389
    %vm396 = vweird.f32 %v390
    %vm397 = vmor %vm395, %vm396
    %v398 = vsel %vm397, %v390, %v394
    %v399 = vand.u32 2147483647, %v389
    %vm400 = vcmp.eq.f32.partialorder %v399, 8.507059e+37
    %v401 = vand.u32 %v389, 2147483648
    %v402 = vor.u32 1.1754944e-38, %v401
    %v403 = vsel %vm400, %v402, %v398
    %v404 = vmul.f32 1.0, %v403
    %v405 = vtanh.pop %v365
    %v406 = vxor.u32 %v366, 2147483648
    %v407 = vmul.f32 %v406, 1.442695
    %v408 = vpow.pop %v407
    %v409 = vadd.f32 %v408, 1.0
    %v410 = vrcp.pop %v409
    %v411 = vmul.f32 %v409, %v410
    %v412 = vsub.f32 1.0, %v411
    %v413 = vmul.f32 %v410, %v412
    %v414 = vadd.f32 %v410, %v413
    %vm415 = vweird.f32 %v409
    %vm416 = vweird.f32 %v410
    %vm417 = vmor %vm415, %vm416
    %v418 = vsel %vm417, %v410, %v414
    %v419 = vand.u32 2147483647, %v409
    %vm420 = vcmp.eq.f32.partialorder %v419, 8.507059e+37
    %v421 = vand.u32 %v409, 2147483648
    %v422 = vor.u32 1.1754944e-38, %v421
    %v423 = vsel %vm420, %v422, %v418
    %v424 = vmul.f32 1.0, %v423
    %v425 = vld [vmem:[#allocation13] sm:$0xff]
    %v426 = vmul.f32 %v404, %v425
    %v427 = vmul.f32 %v385, %v405
    %v428 = vadd.f32 %v426, %v427
    %v429 = vtanh.pop %v428
    %v430 = vmul.f32 %v424, %v429
    %431 = vst [vmem:[#allocation13] sm:$0xff] %v428
    %432 = vst [vmem:[#allocation2] sm:$0xff] %v430
    %433 = vst [vmem:[#allocation12] sm:$0xff] %v430
    // Predicated region
    $region50: #{tpu_custom_call.1} parent=1 // pred_check
      _
    $region51: #{tpu_custom_call.1} parent=1 // pred_check_branch
      %435 = sbr.rel (0) target = $region53
    $region52: #{tpu_custom_call.1} parent=1 // pred_region
      %437 = vsyncadd [#allocation5], 0
      %s439 = sshll.u32 [#allocation12], 4
      %s440 = int_to_ptr.vmem [resolvable:$true] %s439
      %s441 = sshll.u32 %s6, 4
      %s442 = int_to_ptr.hbm [resolvable:$true] %s441
      %444 = dma.vmem_to_hbm [thread:$0]  %s440, 128, %s442, [#allocation5]
    $region53: #{tpu_custom_call.1} parent=1 // pred_fallthru
      _
    // Predicated region
    $region54: #{tpu_custom_call.1} parent=1 // pred_check
      _
    $region55: #{tpu_custom_call.1} parent=1 // pred_check_branch
      %446 = sbr.rel (0) target = $region57
    $region56: #{tpu_custom_call.1} parent=1 // pred_region
      %448 = vsyncadd [#allocation14], 0
      %s450 = sshll.u32 [#allocation13], 4
      %s451 = int_to_ptr.vmem [resolvable:$true] %s450
      %s452 = sshll.u32 %s7, 4
      %s453 = int_to_ptr.hbm [resolvable:$true] %s452
      %455 = dma.vmem_to_hbm [thread:$0]  %s451, 128, %s453, [#allocation14]
    $region57: #{tpu_custom_call.1} parent=1 // pred_fallthru
      _
    // Predicated region
    $region58: #{tpu_custom_call.1} parent=1 // pred_check
      _
    $region59: #{tpu_custom_call.1} parent=1 // pred_check_branch
      %457 = sbr.rel (0) target = $region61
    $region60: #{tpu_custom_call.1} parent=1 // pred_region
      %459 = dma.done [#allocation5], 128
    $region61: #{tpu_custom_call.1} parent=1 // pred_fallthru
      _
    // Predicated region
    $region62: #{tpu_custom_call.1} parent=1 // pred_check
      _
    $region63: #{tpu_custom_call.1} parent=1 // pred_check_branch
      %461 = sbr.rel (0) target = $region65
    $region64: #{tpu_custom_call.1} parent=1 // pred_region
      %463 = dma.done [#allocation14], 128
    $region65: #{tpu_custom_call.1} parent=1 // pred_fallthru
      _
    %464 = vsyncpa [#allocation4], 1
    %465 = vsyncpa [#allocation7], 1
    %466 = vsyncpa [#allocation10], 1
    %467 = vsyncpa [#allocation5], 1
    %468 = vsyncpa [#allocation14], 1

</llo_original>
